<compile_context>
chip_gen: v7x
topology: tpu7x:2x2x1
jax: 0.10.0
libtpu: 0.0.40
codegen_flags: <defaults>
</compile_context>

<pallas_src>
import functools
import math
import random

import jax
import jax.numpy as jnp
from jax import lax
from jax.experimental import pallas as pl
from jax.experimental.pallas import tpu as pltpu
import numpy as np

MAX_REGION_SLOTS = 64  # chunk beyond this (rare); one pass covers <=64 rectangles


def _round_up(a, m):
    return ((a + m - 1) // m) * m


def _next_pow2(n):
    return 1 << max(0, int(n - 1)).bit_length()


def _legalize_th(th, h2, sub):
    """Stripe height must be a sublane multiple or the full extent."""
    if th >= h2 or h2 <= sub:
        return h2
    return max(sub, (th // sub) * sub)


def _choose_tile_h(C, h2, w2, itemsize, sub):
    """~4 MiB per tile (4 live buffers stay well under the 32 MiB scoped VMEM
    we request, on every generation incl. v7x's 64 MiB physical), capped so
    the grid has >= 2 stripes where possible (v7x megacore split)."""
    target_bytes = 4 * 1024 * 1024
    row_bytes = max(1, C * w2 * itemsize)
    th = max(1, target_bytes // row_bytes)
    if h2 > sub:  # leave at least two stripes for the two v7x TensorCores
        th = min(th, _round_up(-(-h2 // 2), sub))
    return _legalize_th(th, h2, sub)


def _touched_stripes(regions, H, rows_per_stripe):
    """Host-side: stripe indices (in the packed row-group space / stripe units
    of `rows_per_stripe` original rows) intersected by any region."""
    touched = set()
    for _, y, _, h in regions:
        y0 = max(0, y)
        y1 = min(H, y + h)
        if y1 <= y0:
            continue
        touched.update(range(y0 // rows_per_stripe, (y1 - 1) // rows_per_stripe + 1))
    return sorted(touched)


@functools.lru_cache(maxsize=None)
def _get_eraser(C, H, W, dtype_name, th, n_stripes, n_slots, packed_k):
    """Build (and cache) a jitted, donated erase call for one static config."""
    dtype = jnp.dtype(dtype_name)
    itemsize = dtype.itemsize
    k = packed_k
    H2, W2 = H // k, W * k  # packed view; k == 1 -> identity

    def kernel(regions_ref, stripes_ref, img_ref, out_ref):
        _, TG, WW = img_ref.shape
        g0 = stripes_ref[pl.program_id(0)] * TG          # first row-group of stripe
        lane = lax.broadcasted_iota(jnp.int32, (1, WW), 1)
        if k > 1:
            # Each sublane row of the packed view holds k original image rows.
            # Recover (row, col) without vector division: unrolled compares on
            # a single (1, WW) vector (VALU has huge slack vs. HBM here).
            lane_row = jnp.zeros((1, WW), jnp.int32)
            for j in range(1, k):
                lane_row = lane_row + (lane >= j * W).astype(jnp.int32)
            col = lane - lane_row * W                                  # (1, WW)
            row = (g0 + lax.broadcasted_iota(jnp.int32, (TG, 1), 0)) * k + lane_row
        else:
            col = lane                                                 # (1, WW)
            row = g0 + lax.broadcasted_iota(jnp.int32, (TG, 1), 0)     # (TG, 1)

        keep = jnp.ones((TG, WW), dtype=jnp.bool_)
        for i in range(n_slots):  # static unroll over the (small) region table
            x = regions_ref[i, 0]
            y = regions_ref[i, 1]
            w = regions_ref[i, 2]
            h = regions_ref[i, 3]
            row_in = (row >= y) & (row < y + h)
            col_in = (col >= x) & (col < x + w)
            keep = keep & jnp.logical_not(row_in & col_in)
        out_ref[...] = jnp.where(keep[None, :, :], img_ref[...],
                                 jnp.zeros((), dtype=out_ref.dtype))

    bytes_touched = 2 * n_stripes * C * th * W2 * itemsize

    call = pl.pallas_call(
        kernel,
        out_shape=jax.ShapeDtypeStruct((C, H2, W2), dtype),
        grid_spec=pltpu.PrefetchScalarGridSpec(
            num_scalar_prefetch=2,           # region table + touched-stripe ids
            grid=(n_stripes,),
            in_specs=[pl.BlockSpec((C, th, W2),
                                   lambda i, regs, strps: (0, strps[i], 0))],
            out_specs=pl.BlockSpec((C, th, W2),
                                   lambda i, regs, strps: (0, strps[i], 0)),
        ),
        # img is arg index 2 (after the two scalar-prefetch arrays); alias it to
        # the output so untouched stripes are never read or written.
        input_output_aliases={2: 0},
        compiler_params=pltpu.CompilerParams(
            dimension_semantics=("parallel",),
            vmem_limit_bytes=32 * 1024 * 1024),
        cost_estimate=pl.CostEstimate(flops=0, transcendentals=0,
                                      bytes_accessed=int(bytes_touched)),
    )

    def run(img, regions, stripes):
        x = img.reshape(C, H2, W2)           # contiguous merge -> bitcast-level
        y = call(regions, stripes, x)
        return y.reshape(C, H, W)

    return jax.jit(run, donate_argnums=(0,))


def apply_erase(img, region_list, tile_h=None):
    """Zero the given rectangles on img (C, H, W) on TPU.

    NOTE: `img` is donated (consumed) so the erase is done in place, matching
    the PyTorch module's in-place mutation. Keep a host copy if you need the
    original.
    """
    C, H, W = img.shape
    dtype = jnp.dtype(img.dtype)
    itemsize = dtype.itemsize
    sub = 8 * max(1, 4 // itemsize)          # f32: 8, bf16: 16, int8: 32

    regions = []
    for r in region_list:
        x, y, w, h = (int(v) for v in r)
        if w > 0 and h > 0 and x < W and y < H and x + w > 0 and y + h > 0:
            regions.append((x, y, w, h))
    if not regions:
        return img

    # Lane-dense packed view for narrow / non-multiple widths when rows pack
    # evenly.  (Auto mode only: an explicit tile_h is interpreted in original
    # rows and uses the natural layout.)
    packed_k = 1
    if tile_h is None and W % 128 != 0:
        k = 128 // math.gcd(W, 128)
        if k > 1 and H % k == 0:
            packed_k = k
    # TODO(synk): pad-free lane-dense path for widths where H % k != 0
    # (falls back to full-W blocks with masked partial stores today).
    H2, W2 = H // packed_k, W * packed_k

    if tile_h is not None:
        th = _legalize_th(int(tile_h), H2, sub)
    else:
        th = _choose_tile_h(C, H2, W2, itemsize, sub)
    rows_per_stripe = th * packed_k          # stripe height in original rows

    out = img
    for start in range(0, len(regions), MAX_REGION_SLOTS):
        chunk = regions[start:start + MAX_REGION_SLOTS]
        stripes = _touched_stripes(chunk, H, rows_per_stripe)
        if not stripes:
            continue
        n_slots = _next_pow2(len(chunk))     # bound recompiles; zero rows are no-ops
        table = np.zeros((n_slots, 4), dtype=np.int32)
        for i, r in enumerate(chunk):
            table[i] = r
        fn = _get_eraser(int(C), int(H), int(W), dtype.name, int(th),
                         len(stripes), int(n_slots), int(packed_k))
        out = fn(out, jnp.asarray(table),
                 jnp.asarray(np.asarray(stripes, dtype=np.int32)))
    return out


class RandomEraserMultiRegion:
    """JAX/Pallas port of RANDOM_ERASER_MULTI_REGION.

    Region selection reproduces the PyTorch module's Python `random` logic
    (host-side, deterministic via a seeded random.Random); the rectangle
    zeroing runs in the Pallas kernel.  The input image buffer is donated.
    """

    def __init__(self, erase_thresh=0.3, origin_prob=0.2, multi_region=5, seed=0):
        self.erase_thresh = erase_thresh
        self.origin_prob = origin_prob
        if multi_region < 1:
            multi_region = 1
        self.multi_region = multi_region
        self._rng = random.Random(seed)

    def __call__(self, img, region=None):
        band, ysize, xsize = img.shape
        if region is None:
            region = []
            if self._rng.random() > self.origin_prob:
                region_num = self._rng.randint(1, self.multi_region)
                for _ in range(region_num):
                    x = self._rng.randint(0, xsize - 1)
                    y = self._rng.randint(0, ysize - 1)
                    w = self._rng.randint(1, xsize - x)
                    h = self._rng.randint(1, ysize - y)
                    if w * h / (xsize * ysize) > self.erase_thresh:
                        h = math.floor(xsize * ysize * self.erase_thresh / w)
                    region.append([x, y, w, h])
        erased = apply_erase(img, region)
        return erased, region


def _reference_numpy(img_np, region):
    out = np.array(img_np)
    for x, y, w, h in region:
        if w > 0 and h > 0:
            out[:, y:y + h, x:x + w] = 0
    return out


if __name__ == "__main__":
    key = jax.random.PRNGKey(0)

    # --- test 1 & 2: small image (W=16 -> lane-dense packed view), random +
    # explicit regions.  Keep a host copy: device arrays are donated.
    band, ysize, xsize = 4, 16, 16
    img_np = np.asarray(jax.random.normal(key, (band, ysize, xsize),
                                          dtype=jnp.float32))

    eraser = RandomEraserMultiRegion(erase_thresh=0.3, origin_prob=0.2,
                                     multi_region=5, seed=0)

    out1, regions1 = eraser(jnp.asarray(img_np))
    out1 = jax.block_until_ready(out1)
    np.testing.assert_allclose(np.asarray(out1),
                               _reference_numpy(img_np, regions1),
                               rtol=0, atol=0)

    explicit = [[2, 3, 5, 4], [0, 0, 3, 3]]
    out2, regions2 = eraser(jnp.asarray(img_np), region=explicit)
    out2 = jax.block_until_ready(out2)
    np.testing.assert_allclose(np.asarray(out2),
                               _reference_numpy(img_np, regions2),
                               rtol=0, atol=0)

    # --- test 3: multi-stripe grid (explicit tile_h), 10 regions in ONE pass.
    img3_np = np.asarray(jax.random.normal(jax.random.PRNGKey(1), (3, 64, 128),
                                           dtype=jnp.float32))
    many_regions = [[5, 2, 10, 6], [100, 40, 20, 20], [0, 30, 4, 4],
                    [60, 0, 8, 3], [30, 50, 50, 10], [12, 12, 2, 2],
                    [90, 8, 5, 5], [20, 20, 9, 9], [64, 32, 16, 16],
                    [1, 60, 100, 3]]
    out3 = jax.block_until_ready(
        apply_erase(jnp.asarray(img3_np), many_regions, tile_h=8))
    np.testing.assert_allclose(np.asarray(out3),
                               _reference_numpy(img3_np, many_regions),
                               rtol=0, atol=0)

    # --- test 4: taller image, one small region -> only the touched stripe is
    # read/written; the aliased buffer must keep untouched rows bit-exact.
    img4_np = np.asarray(jax.random.normal(jax.random.PRNGKey(2), (2, 256, 256),
                                           dtype=jnp.float32))
    single = [[10, 5, 50, 20]]
    out4 = jax.block_until_ready(apply_erase(jnp.asarray(img4_np), single))
    np.testing.assert_allclose(np.asarray(out4),
                               _reference_numpy(img4_np, single),
                               rtol=0, atol=0)

    print("KERNEL_OK")
</pallas_src>

<mosaic_0001>
module attributes {stable_mosaic.version = 11 : i64} {
  func.func @kernel(%arg0: i32, %arg1: memref<4x4xi32, #tpu.memory_space<smem>>, %arg2: memref<1xi32, #tpu.memory_space<smem>>, %arg3: memref<4x2x128xf32, #tpu.memory_space<vmem>>, %arg4: memref<4x2x128xf32, #tpu.memory_space<vmem>>) attributes {dimension_semantics = [#tpu.dimension_semantics<parallel>], iteration_bounds = array<i64: 1>, scalar_prefetch = 2 : i64, scratch_operands = 0 : i64, tpu.core_type = #tpu.core_type<tc>, window_params = [{transform_indices = @transform_0, window_bounds = array<i64: 4, 2, 128>}, {transform_indices = @transform_1, window_bounds = array<i64: 4, 2, 128>}]} {
    %0 = arith.index_cast %arg0 : i32 to index
    %1 = memref.load %arg2[%0] : memref<1xi32, #tpu.memory_space<smem>>
    %c2_i32 = arith.constant 2 : i32
    %2 = arith.muli %1, %c2_i32 : i32
    %3 = tpu.iota {dimensions = array<i32: 1>} : vector<1x128xi32>
    %c0_i32 = arith.constant 0 : i32
    %4 = vector.broadcast %c0_i32 : i32 to vector<1x128xi32>
    %c16_i32 = arith.constant 16 : i32
    %5 = vector.broadcast %c16_i32 : i32 to vector<1x128xi32>
    %6 = arith.cmpi sge, %3, %5 : vector<1x128xi32>
    %7 = arith.extui %6 : vector<1x128xi1> to vector<1x128xi32>
    %8 = arith.addi %4, %7 : vector<1x128xi32>
    %c32_i32 = arith.constant 32 : i32
    %9 = vector.broadcast %c32_i32 : i32 to vector<1x128xi32>
    %10 = arith.cmpi sge, %3, %9 : vector<1x128xi32>
    %11 = arith.extui %10 : vector<1x128xi1> to vector<1x128xi32>
    %12 = arith.addi %8, %11 : vector<1x128xi32>
    %c48_i32 = arith.constant 48 : i32
    %13 = vector.broadcast %c48_i32 : i32 to vector<1x128xi32>
    %14 = arith.cmpi sge, %3, %13 : vector<1x128xi32>
    %15 = arith.extui %14 : vector<1x128xi1> to vector<1x128xi32>
    %16 = arith.addi %12, %15 : vector<1x128xi32>
    %c64_i32 = arith.constant 64 : i32
    %17 = vector.broadcast %c64_i32 : i32 to vector<1x128xi32>
    %18 = arith.cmpi sge, %3, %17 : vector<1x128xi32>
    %19 = arith.extui %18 : vector<1x128xi1> to vector<1x128xi32>
    %20 = arith.addi %16, %19 : vector<1x128xi32>
    %c80_i32 = arith.constant 80 : i32
    %21 = vector.broadcast %c80_i32 : i32 to vector<1x128xi32>
    %22 = arith.cmpi sge, %3, %21 : vector<1x128xi32>
    %23 = arith.extui %22 : vector<1x128xi1> to vector<1x128xi32>
    %24 = arith.addi %20, %23 : vector<1x128xi32>
    %c96_i32 = arith.constant 96 : i32
    %25 = vector.broadcast %c96_i32 : i32 to vector<1x128xi32>
    %26 = arith.cmpi sge, %3, %25 : vector<1x128xi32>
    %27 = arith.extui %26 : vector<1x128xi1> to vector<1x128xi32>
    %28 = arith.addi %24, %27 : vector<1x128xi32>
    %c112_i32 = arith.constant 112 : i32
    %29 = vector.broadcast %c112_i32 : i32 to vector<1x128xi32>
    %30 = arith.cmpi sge, %3, %29 : vector<1x128xi32>
    %31 = arith.extui %30 : vector<1x128xi1> to vector<1x128xi32>
    %32 = arith.addi %28, %31 : vector<1x128xi32>
    %c16_i32_0 = arith.constant 16 : i32
    %33 = vector.broadcast %c16_i32_0 : i32 to vector<1x128xi32>
    %34 = arith.muli %32, %33 : vector<1x128xi32>
    %35 = arith.subi %3, %34 : vector<1x128xi32>
    %36 = tpu.iota {dimensions = array<i32: 0>} : vector<2x1xi32>
    %37 = vector.broadcast %2 : i32 to vector<2x1xi32>
    %38 = arith.addi %37, %36 : vector<2x1xi32>
    %c8_i32 = arith.constant 8 : i32
    %39 = vector.broadcast %c8_i32 : i32 to vector<2x1xi32>
    %40 = arith.muli %38, %39 : vector<2x1xi32>
    %41 = vector.broadcast %40 : vector<2x1xi32> to vector<2x128xi32>
    %42 = vector.broadcast %32 : vector<1x128xi32> to vector<2x128xi32>
    %43 = arith.addi %41, %42 : vector<2x128xi32>
    %true = arith.constant true
    %44 = vector.broadcast %true : i1 to vector<2x128xi1>
    %c0 = arith.constant 0 : index
    %c0_1 = arith.constant 0 : index
    %45 = memref.load %arg1[%c0, %c0_1] : memref<4x4xi32, #tpu.memory_space<smem>>
    %c0_2 = arith.constant 0 : index
    %c1 = arith.constant 1 : index
    %46 = memref.load %arg1[%c0_2, %c1] : memref<4x4xi32, #tpu.memory_space<smem>>
    %c0_3 = arith.constant 0 : index
    %c2 = arith.constant 2 : index
    %47 = memref.load %arg1[%c0_3, %c2] : memref<4x4xi32, #tpu.memory_space<smem>>
    %c0_4 = arith.constant 0 : index
    %c3 = arith.constant 3 : index
    %48 = memref.load %arg1[%c0_4, %c3] : memref<4x4xi32, #tpu.memory_space<smem>>
    %49 = vector.broadcast %46 : i32 to vector<2x128xi32>
    %50 = arith.cmpi sge, %43, %49 : vector<2x128xi32>
    %51 = arith.addi %46, %48 : i32
    %52 = vector.broadcast %51 : i32 to vector<2x128xi32>
    %53 = arith.cmpi slt, %43, %52 : vector<2x128xi32>
    %54 = arith.andi %50, %53 : vector<2x128xi1>
    %55 = vector.broadcast %45 : i32 to vector<1x128xi32>
    %56 = arith.cmpi sge, %35, %55 : vector<1x128xi32>
    %57 = arith.addi %45, %47 : i32
    %58 = vector.broadcast %57 : i32 to vector<1x128xi32>
    %59 = arith.cmpi slt, %35, %58 : vector<1x128xi32>
    %60 = arith.andi %56, %59 : vector<1x128xi1>
    %61 = vector.broadcast %60 : vector<1x128xi1> to vector<2x128xi1>
    %62 = arith.andi %54, %61 : vector<2x128xi1>
    %cst = arith.constant dense<true> : vector<2x128xi1>
    %63 = arith.xori %62, %cst : vector<2x128xi1>
    %64 = arith.andi %44, %63 : vector<2x128xi1>
    %c1_5 = arith.constant 1 : index
    %c0_6 = arith.constant 0 : index
    %65 = memref.load %arg1[%c1_5, %c0_6] : memref<4x4xi32, #tpu.memory_space<smem>>
    %c1_7 = arith.constant 1 : index
    %c1_8 = arith.constant 1 : index
    %66 = memref.load %arg1[%c1_7, %c1_8] : memref<4x4xi32, #tpu.memory_space<smem>>
    %c1_9 = arith.constant 1 : index
    %c2_10 = arith.constant 2 : index
    %67 = memref.load %arg1[%c1_9, %c2_10] : memref<4x4xi32, #tpu.memory_space<smem>>
    %c1_11 = arith.constant 1 : index
    %c3_12 = arith.constant 3 : index
    %68 = memref.load %arg1[%c1_11, %c3_12] : memref<4x4xi32, #tpu.memory_space<smem>>
    %69 = vector.broadcast %66 : i32 to vector<2x128xi32>
    %70 = arith.cmpi sge, %43, %69 : vector<2x128xi32>
    %71 = arith.addi %66, %68 : i32
    %72 = vector.broadcast %71 : i32 to vector<2x128xi32>
    %73 = arith.cmpi slt, %43, %72 : vector<2x128xi32>
    %74 = arith.andi %70, %73 : vector<2x128xi1>
    %75 = vector.broadcast %65 : i32 to vector<1x128xi32>
    %76 = arith.cmpi sge, %35, %75 : vector<1x128xi32>
    %77 = arith.addi %65, %67 : i32
    %78 = vector.broadcast %77 : i32 to vector<1x128xi32>
    %79 = arith.cmpi slt, %35, %78 : vector<1x128xi32>
    %80 = arith.andi %76, %79 : vector<1x128xi1>
    %81 = vector.broadcast %80 : vector<1x128xi1> to vector<2x128xi1>
    %82 = arith.andi %74, %81 : vector<2x128xi1>
    %cst_13 = arith.constant dense<true> : vector<2x128xi1>
    %83 = arith.xori %82, %cst_13 : vector<2x128xi1>
    %84 = arith.andi %64, %83 : vector<2x128xi1>
    %c2_14 = arith.constant 2 : index
    %c0_15 = arith.constant 0 : index
    %85 = memref.load %arg1[%c2_14, %c0_15] : memref<4x4xi32, #tpu.memory_space<smem>>
    %c2_16 = arith.constant 2 : index
    %c1_17 = arith.constant 1 : index
    %86 = memref.load %arg1[%c2_16, %c1_17] : memref<4x4xi32, #tpu.memory_space<smem>>
    %c2_18 = arith.constant 2 : index
    %c2_19 = arith.constant 2 : index
    %87 = memref.load %arg1[%c2_18, %c2_19] : memref<4x4xi32, #tpu.memory_space<smem>>
    %c2_20 = arith.constant 2 : index
    %c3_21 = arith.constant 3 : index
    %88 = memref.load %arg1[%c2_20, %c3_21] : memref<4x4xi32, #tpu.memory_space<smem>>
    %89 = vector.broadcast %86 : i32 to vector<2x128xi32>
    %90 = arith.cmpi sge, %43, %89 : vector<2x128xi32>
    %91 = arith.addi %86, %88 : i32
    %92 = vector.broadcast %91 : i32 to vector<2x128xi32>
    %93 = arith.cmpi slt, %43, %92 : vector<2x128xi32>
    %94 = arith.andi %90, %93 : vector<2x128xi1>
    %95 = vector.broadcast %85 : i32 to vector<1x128xi32>
    %96 = arith.cmpi sge, %35, %95 : vector<1x128xi32>
    %97 = arith.addi %85, %87 : i32
    %98 = vector.broadcast %97 : i32 to vector<1x128xi32>
    %99 = arith.cmpi slt, %35, %98 : vector<1x128xi32>
    %100 = arith.andi %96, %99 : vector<1x128xi1>
    %101 = vector.broadcast %100 : vector<1x128xi1> to vector<2x128xi1>
    %102 = arith.andi %94, %101 : vector<2x128xi1>
    %cst_22 = arith.constant dense<true> : vector<2x128xi1>
    %103 = arith.xori %102, %cst_22 : vector<2x128xi1>
    %104 = arith.andi %84, %103 : vector<2x128xi1>
    %c3_23 = arith.constant 3 : index
    %c0_24 = arith.constant 0 : index
    %105 = memref.load %arg1[%c3_23, %c0_24] : memref<4x4xi32, #tpu.memory_space<smem>>
    %c3_25 = arith.constant 3 : index
    %c1_26 = arith.constant 1 : index
    %106 = memref.load %arg1[%c3_25, %c1_26] : memref<4x4xi32, #tpu.memory_space<smem>>
    %c3_27 = arith.constant 3 : index
    %c2_28 = arith.constant 2 : index
    %107 = memref.load %arg1[%c3_27, %c2_28] : memref<4x4xi32, #tpu.memory_space<smem>>
    %c3_29 = arith.constant 3 : index
    %c3_30 = arith.constant 3 : index
    %108 = memref.load %arg1[%c3_29, %c3_30] : memref<4x4xi32, #tpu.memory_space<smem>>
    %109 = vector.broadcast %106 : i32 to vector<2x128xi32>
    %110 = arith.cmpi sge, %43, %109 : vector<2x128xi32>
    %111 = arith.addi %106, %108 : i32
    %112 = vector.broadcast %111 : i32 to vector<2x128xi32>
    %113 = arith.cmpi slt, %43, %112 : vector<2x128xi32>
    %114 = arith.andi %110, %113 : vector<2x128xi1>
    %115 = vector.broadcast %105 : i32 to vector<1x128xi32>
    %116 = arith.cmpi sge, %35, %115 : vector<1x128xi32>
    %117 = arith.addi %105, %107 : i32
    %118 = vector.broadcast %117 : i32 to vector<1x128xi32>
    %119 = arith.cmpi slt, %35, %118 : vector<1x128xi32>
    %120 = arith.andi %116, %119 : vector<1x128xi1>
    %121 = vector.broadcast %120 : vector<1x128xi1> to vector<2x128xi1>
    %122 = arith.andi %114, %121 : vector<2x128xi1>
    %cst_31 = arith.constant dense<true> : vector<2x128xi1>
    %123 = arith.xori %122, %cst_31 : vector<2x128xi1>
    %124 = arith.andi %104, %123 : vector<2x128xi1>
    %125 = vector.shape_cast %124 : vector<2x128xi1> to vector<1x2x128xi1>
    %c0_32 = arith.constant 0 : index
    %c0_33 = arith.constant 0 : index
    %c0_34 = arith.constant 0 : index
    %126 = vector.load %arg3[%c0_32, %c0_33, %c0_34] : memref<4x2x128xf32, #tpu.memory_space<vmem>>, vector<4x2x128xf32>
    %cst_35 = arith.constant 0.000000e+00 : f32
    %127 = vector.shape_cast %125 : vector<1x2x128xi1> to vector<1x2x128xi1>
    %128 = vector.broadcast %127 : vector<1x2x128xi1> to vector<4x2x128xi1>
    %129 = vector.broadcast %cst_35 : f32 to vector<4x2x128xf32>
    %130 = arith.select %128, %126, %129 : vector<4x2x128xi1>, vector<4x2x128xf32>
    %c0_36 = arith.constant 0 : index
    %c0_37 = arith.constant 0 : index
    %c0_38 = arith.constant 0 : index
    %131 = vector.load %arg4[%c0_36, %c0_37, %c0_38] : memref<4x2x128xf32, #tpu.memory_space<vmem>>, vector<4x2x128xf32>
    tpu.vector_store %arg4[%c0_36, %c0_37, %c0_38], %130 {strides = array<i32>} : memref<4x2x128xf32, #tpu.memory_space<vmem>>, vector<4x2x128xf32>,
    return
  }
  func.func @transform_0(%arg0: i32, %arg1: memref<4x4xi32, #tpu.memory_space<smem>>, %arg2: memref<1xi32, #tpu.memory_space<smem>>) -> (i32, i32, i32) {
    %0 = arith.index_cast %arg0 : i32 to index
    %1 = memref.load %arg2[%0] : memref<1xi32, #tpu.memory_space<smem>>
    %c0_i32 = arith.constant 0 : i32
    %c0_i32_0 = arith.constant 0 : i32
    %c0_i32_1 = arith.constant 0 : i32
    return %c0_i32, %1, %c0_i32_0 : i32, i32, i32
  }
  func.func @transform_1(%arg0: i32, %arg1: memref<4x4xi32, #tpu.memory_space<smem>>, %arg2: memref<1xi32, #tpu.memory_space<smem>>) -> (i32, i32, i32) {
    %0 = arith.index_cast %arg0 : i32 to index
    %1 = memref.load %arg2[%0] : memref<1xi32, #tpu.memory_space<smem>>
    %c0_i32 = arith.constant 0 : i32
    %c0_i32_0 = arith.constant 0 : i32
    %c0_i32_1 = arith.constant 0 : i32
    return %c0_i32, %1, %c0_i32_0 : i32, i32, i32
  }
}

</mosaic_0001>

<llo_original>
// kernel: run.1
$region0: #{run.1}
  #allocation0 [shape = 'u32[]', space=smem, size = 0x4, offset = 0x4, fixed_abs, tag = 'smem constant byte address 0x4 - core index']
  #allocation1 [shape = 'u32[144,128]{1,0:T(1,128)}', space=vmem, size = 0x12000, scoped, tag = 'internal scratch']
  #allocation2 [shape = 's32[1]{0}', space=sflag, size = 0x4, scoped, tag = 'scoped memory for run.1']
  #allocation3 [shape = 'u8[2048]{0}', space=smem, size = 0x800, scoped, tag = 'prefetched SMEM operand 0']
  #allocation4 [shape = 's32[1]{0:T(128)S(6)}', space=smem, size = 0x200, scoped, tag = 'prefetched SMEM operand 1']
  %s0 = inlined_call_operand.vmem [shape: s32[4,4], index: 0, kind: input, shape index: {}]
  %s1 = inlined_call_operand.<no memory space> [shape: s32[1], index: 1, kind: input, shape index: {}]
  %s2 = inlined_call_operand.vmem [shape: f32[4,2,128], index: 2, kind: input, shape index: {}, may-alias: {2,3}]
  %s3 = inlined_call_operand.vmem [shape: f32[4,2,128], index: 3, kind: output, shape index: {}, may-alias: {2,3}]
  %s4 = sld [smem:[#allocation0]]
  $region14: #{run.1} parent=0
    _
  %s6 = ssub.s32 1, %s4
  %s7 = scalar_select 0, %s6, %s4
  %s8 = sshll.u32 %s0, 4
  %s9 = int_to_ptr.vmem [resolvable:$true] %s8
  %11 = dma.vmem_to_smem %s9, 64, [#allocation3], [#allocation2]
  %12 = sst [smem:[#allocation4]] %s1
  %13 = dma.done [#allocation2], 64
  %14 = sfence
  // Predicated region
  $region2: #{run.1} parent=0 // pred_check
    _
  $region3: #{run.1} parent=0 // pred_check_branch
    %16 = sbr.rel (0) target = $region5
  $region4: #{run.1} parent=0 // pred_region
    %s17 = sld [smem:[#allocation4]]
    %p18 = scmp.lt.s32.totalorder %s17, 0
    %s19 = scalar_select %p18, %s17, 0
    %s20 = smul.addr %s19, 2
    %s21 = scalar_lea.vmem %s2, %s20
    %s22 = sld [smem:[#allocation4]]
  $region5: #{run.1} parent=0 // pred_fallthru
    _
  %s23 = sld [smem:[#allocation4]]
  %p24 = scmp.lt.s32.totalorder %s23, 0
  %s25 = scalar_select %p24, %s23, 0
  %s26 = smul.addr %s25, 2
  %s27 = scalar_lea.vmem %s2, %s26
  %s28 = sld [smem:[#allocation4]]
  %p29 = scmp.lt.s32.totalorder %s28, 0
  %s30 = scalar_select %p29, %s28, 0
  %s31 = smul.addr %s30, 2
  %s32 = scalar_lea.vmem %s3, %s31
  %s33 = sld [smem:[#allocation4]]
  %p34 = scmp.lt.s32.totalorder %s33, 0
  %s35 = scalar_select %p34, %s33, 0
  %s36 = smul.addr %s35, 2
  %s37 = scalar_lea.vmem %s2, %s36
  %s38 = sld [smem:[#allocation4]]
  %s39 = sld [smem:[#allocation4]]
  %p40 = scmp.lt.s32.totalorder %s39, 0
  %s41 = scalar_select %p40, %s39, 0
  %s42 = smul.addr %s41, 2
  %s43 = scalar_lea.vmem %s3, %s42
  %s44 = sld [smem:[#allocation4]]
  %s45 = sld [smem:[#allocation4]]
  %s46 = smul.u32 %s45, 2
  %v47 = vlaneseq
  %v48 = vand.u32 %v47, 127
  %vm49 = vcmp.ge.s32.totalorder %v48, 16
  %v50 = vsel %vm49, 1, 0
  %vm51 = vcmp.ge.s32.totalorder %v48, 32
  %v52 = vsel %vm51, 1, 0
  %v53 = vadd.s32 %v50, %v52
  %vm54 = vcmp.ge.s32.totalorder %v48, 48
  %v55 = vsel %vm54, 1, 0
  %v56 = vadd.s32 %v53, %v55
  %vm57 = vcmp.ge.s32.totalorder %v48, 64
  %v58 = vsel %vm57, 1, 0
  %v59 = vadd.s32 %v56, %v58
  %vm60 = vcmp.ge.s32.totalorder %v48, 80
  %v61 = vsel %vm60, 1, 0
  %v62 = vadd.s32 %v59, %v61
  %vm63 = vcmp.ge.s32.totalorder %v48, 96
  %v64 = vsel %vm63, 1, 0
  %v65 = vadd.s32 %v62, %v64
  %vm66 = vcmp.ge.s32.totalorder %v48, 112
  %v67 = vsel %vm66, 1, 0
  %v68 = vadd.s32 %v65, %v67
  %v69 = vmul.u32 %v68, 16
  %v70 = vsub.s32 %v48, %v69
  %v71 = vlaneseq
  %v72 = vshrl.u32 %v71, 7
  %v73 = vstv %s46
  %v74 = vadd.s32 %v73, %v72
  %v75 = vmul.u32 %v74, 8
  %v76 = vadd.s32 %v75, %v68
  %s77 = sld [smem:[#allocation3]]
  %s78 = sld [smem:[#allocation3 + $0x1]]
  %s79 = sld [smem:[#allocation3 + $0x2]]
  %s80 = sld [smem:[#allocation3 + $0x3]]
  %v81 = vstv %s78
  %vm82 = vcmp.ge.s32.totalorder %v76, %v81
  %s83 = sadd.s32 %s78, %s80
  %v84 = vstv %s83
  %vm85 = vcmp.lt.s32.totalorder %v76, %v84
  %vm86 = vmand %vm82, %vm85
  %v87 = vstv %s77
  %vm88 = vcmp.ge.s32.totalorder %v70, %v87
  %s89 = sadd.s32 %s77, %s79
  %v90 = vstv %s89
  %vm91 = vcmp.lt.s32.totalorder %v70, %v90
  %vm92 = vmand %vm88, %vm91
  %v93 = vsel %vm92, 1, 0
  %vm94 = vcmp.eq.s32.totalorder %v93, 1
  %vm95 = vmand %vm86, %vm94
  %vm96 = vmxor %vm95, 1
  %s97 = sld [smem:[#allocation3 + $0x80]]
  %s98 = sld [smem:[#allocation3 + $0x81]]
  %s99 = sld [smem:[#allocation3 + $0x82]]
  %s100 = sld [smem:[#allocation3 + $0x83]]
  %v101 = vstv %s98
  %vm102 = vcmp.ge.s32.totalorder %v76, %v101
  %s103 = sadd.s32 %s98, %s100
  %v104 = vstv %s103
  %vm105 = vcmp.lt.s32.totalorder %v76, %v104
  %vm106 = vmand %vm102, %vm105
  %v107 = vstv %s97
  %vm108 = vcmp.ge.s32.totalorder %v70, %v107
  %s109 = sadd.s32 %s97, %s99
  %v110 = vstv %s109
  %vm111 = vcmp.lt.s32.totalorder %v70, %v110
  %vm112 = vmand %vm108, %vm111
  %v113 = vsel %vm112, 1, 0
  %vm114 = vcmp.eq.s32.totalorder %v113, 1
  %vm115 = vmand %vm106, %vm114
  %vm116 = vmxor %vm115, 1
  %vm117 = vmand %vm96, %vm116
  %s118 = sld [smem:[#allocation3 + $0x100]]
  %s119 = sld [smem:[#allocation3 + $0x101]]
  %s120 = sld [smem:[#allocation3 + $0x102]]
  %s121 = sld [smem:[#allocation3 + $0x103]]
  %v122 = vstv %s119
  %vm123 = vcmp.ge.s32.totalorder %v76, %v122
  %s124 = sadd.s32 %s119, %s121
  %v125 = vstv %s124
  %vm126 = vcmp.lt.s32.totalorder %v76, %v125
  %vm127 = vmand %vm123, %vm126
  %v128 = vstv %s118
  %vm129 = vcmp.ge.s32.totalorder %v70, %v128
  %s130 = sadd.s32 %s118, %s120
  %v131 = vstv %s130
  %vm132 = vcmp.lt.s32.totalorder %v70, %v131
  %vm133 = vmand %vm129, %vm132
  %v134 = vsel %vm133, 1, 0
  %vm135 = vcmp.eq.s32.totalorder %v134, 1
  %vm136 = vmand %vm127, %vm135
  %vm137 = vmxor %vm136, 1
  %vm138 = vmand %vm117, %vm137
  %s139 = sld [smem:[#allocation3 + $0x180]]
  %s140 = sld [smem:[#allocation3 + $0x181]]
  %s141 = sld [smem:[#allocation3 + $0x182]]
  %s142 = sld [smem:[#allocation3 + $0x183]]
  %v143 = vstv %s140
  %vm144 = vcmp.ge.s32.totalorder %v76, %v143
  %s145 = sadd.s32 %s140, %s142
  %v146 = vstv %s145
  %vm147 = vcmp.lt.s32.totalorder %v76, %v146
  %vm148 = vmand %vm144, %vm147
  %v149 = vstv %s139
  %vm150 = vcmp.ge.s32.totalorder %v70, %v149
  %s151 = sadd.s32 %s139, %s141
  %v152 = vstv %s151
  %vm153 = vcmp.lt.s32.totalorder %v70, %v152
  %vm154 = vmand %vm150, %vm153
  %v155 = vsel %vm154, 1, 0
  %vm156 = vcmp.eq.s32.totalorder %v155, 1
  %vm157 = vmand %vm148, %vm156
  %vm158 = vmxor %vm157, 1
  %vm159 = vmand %vm138, %vm158
  %v160 = vld [vmem:[%s37] sm:$0x3]
  %v161 = vld [vmem:[%s37 + $0x2] sm:$0x3]
  %v162 = vld [vmem:[%s37 + $0x4] sm:$0x3]
  %v163 = vld [vmem:[%s37 + $0x6] sm:$0x3]
  %v164 = vsel %vm159, 1, 0
  %vm165 = vcmp.eq.s32.totalorder %v164, 1
  %v166 = vsel %vm165, %v160, 0.0
  %v167 = vsel %vm165, %v161, 0.0
  %v168 = vsel %vm165, %v162, 0.0
  %v169 = vsel %vm165, %v163, 0.0
  %170 = vst [vmem:[%s43] sm:$0x3] %v166
  %171 = vst [vmem:[%s43 + $0x2] sm:$0x3] %v167
  %172 = vst [vmem:[%s43 + $0x4] sm:$0x3] %v168
  %173 = vst [vmem:[%s43 + $0x6] sm:$0x3] %v169
  %s174 = sld [smem:[#allocation4]]
  %p175 = scmp.lt.s32.totalorder %s174, 0
  %s176 = scalar_select %p175, %s174, 0
  %s177 = smul.addr %s176, 2
  %s178 = scalar_lea.vmem %s3, %s177
  // Predicated region
  $region6: #{run.1} parent=0 // pred_check
    _
  $region7: #{run.1} parent=0 // pred_check_branch
    %180 = sbr.rel (0) target = $region9
  $region8: #{run.1} parent=0 // pred_region
    %s181 = sld [smem:[#allocation4]]
  $region9: #{run.1} parent=0 // pred_fallthru
    _
  // Predicated region
  $region10: #{run.1} parent=0 // pred_check
    _
  $region11: #{run.1} parent=0 // pred_check_branch
    %183 = sbr.rel (0) target = $region13
  $region12: #{run.1} parent=0 // pred_region
    %s184 = sld [smem:[#allocation4]]
    %p185 = scmp.lt.s32.totalorder %s184, 0
    %s186 = scalar_select %p185, %s184, 0
    %s187 = smul.addr %s186, 2
    %s188 = scalar_lea.vmem %s3, %s187
  $region13: #{run.1} parent=0 // pred_fallthru
    _

</llo_original>
